<compile_context>
chip_gen: v7x
topology: tpu7x:2x2x1
jax: 0.10.0
libtpu: 0.0.40
codegen_flags: <defaults>
</compile_context>

<pallas_src>
import jax
import jax.numpy as jnp
from jax.experimental import pallas as pl
from jax.experimental.pallas import tpu as pltpu


def _self_reflection_kernel(adj_ref, cur_ref, out_ref):
    # adj_ref: SMEM (1,) f32  -- precomputed global adjustment scalar
    # cur_ref: VMEM lane-dense row-tile of current_state
    # out_ref: VMEM row-tile of output
    adj = adj_ref[0].astype(cur_ref.dtype)   # one scalar cast per grid step
    out_ref[...] = cur_ref[...] + adj        # native-dtype streaming add


def _round_up(x, m):
    return -(-x // m) * m


def self_reflection_forward(current_state, past_interactions, reflection_factor,
                            *, target_block_bytes=4 * 1024 * 1024):
    """Pallas forward pass for SelfReflectionLayer.

    current_state, past_interactions: any-shaped arrays (e.g. NCHW).
    reflection_factor: shape (1,) parameter.
    """
    orig_shape = current_state.shape
    dtype = current_state.dtype
    total = current_state.size
    itemsize = jnp.dtype(dtype).itemsize

    # --- global scalar adjustment in f32 (outside the kernel) ---------------
    adj = (jnp.mean(past_interactions.astype(jnp.float32))
           * reflection_factor.astype(jnp.float32)[0])
    adj = jnp.reshape(adj, (1,)).astype(jnp.float32)

    # --- lane-dense flatten; avoid padding whenever a lane width divides ----
    lane = 512
    for cand in (512, 256, 128):
        if total % cand == 0:
            lane = cand
            break

    rows = -(-total // lane)                 # ceil(total / lane)
    padded_total = rows * lane
    needs_pad = padded_total != total

    flat = current_state.reshape(-1)
    if needs_pad:
        flat = jnp.pad(flat, (0, padded_total - total))
    cur2d = flat.reshape(rows, lane)

    # dtype-aware sublane multiple: f32 -> 8, bf16 -> 16, int8/fp8 -> 32
    sub = max(8, 32 // itemsize)

    # ~target_block_bytes per tile, constant in bytes across dtypes.
    block_rows = max(sub, target_block_bytes // (lane * itemsize))
    block_rows = _round_up(block_rows, sub)

    if rows <= block_rows:
        if rows >= 2 * sub:
            # Keep at least 2 blocks so the "parallel" axis can shard across
            # the two TensorCores on v7x even for mid-size inputs.
            block_rows = _round_up(-(-rows // 2), sub)
        elif rows >= sub:
            block_rows = _round_up(rows, sub)
        else:
            block_rows = rows            # full-dim block for tiny inputs

    grid = (pl.cdiv(rows, block_rows),)

    out2d = pl.pallas_call(
        _self_reflection_kernel,
        out_shape=jax.ShapeDtypeStruct(cur2d.shape, dtype),
        grid_spec=pltpu.PrefetchScalarGridSpec(
            num_scalar_prefetch=0,
            grid=grid,
            in_specs=[
                # adjustment scalar lives in SMEM
                pl.BlockSpec(memory_space=pltpu.MemorySpace.SMEM),
                # current_state: lane-dense row tiles (~4 MiB per block)
                pl.BlockSpec((block_rows, lane), lambda i: (i, 0)),
            ],
            out_specs=pl.BlockSpec((block_rows, lane), lambda i: (i, 0)),
        ),
        compiler_params=pltpu.CompilerParams(
            dimension_semantics=("parallel",),
            vmem_limit_bytes=32 * 1024 * 1024,
        ),
        cost_estimate=pl.CostEstimate(
            flops=total,
            transcendentals=0,
            bytes_accessed=2 * total * itemsize,
        ),
    )(adj, cur2d)

    out1d = out2d.reshape(-1)
    if needs_pad:
        out1d = out1d[:total]
    return out1d.reshape(orig_shape)


if __name__ == "__main__":
    key = jax.random.PRNGKey(0)
    k1, k2, k3 = jax.random.split(key, 3)

    # Small NCHW shapes (PyTorch convention).
    current_state = jax.random.normal(k1, (2, 4, 16, 16), dtype=jnp.float32)
    past_interactions = jax.random.normal(k2, (2, 4, 16, 16), dtype=jnp.float32)
    # nn.Parameter(torch.randn(1)) -> deterministic synthetic init.
    reflection_factor = jax.random.normal(k3, (1,), dtype=jnp.float32)

    out = self_reflection_forward(current_state, past_interactions,
                                  reflection_factor)
    out = jax.block_until_ready(out)

    # Pure-JAX reference check.
    ref = current_state + jnp.mean(past_interactions) * reflection_factor[0]
    assert out.shape == current_state.shape
    assert jnp.allclose(out, ref, atol=1e-5, rtol=1e-5), "mismatch vs reference"

    print("KERNEL_OK")
</pallas_src>

<mosaic_0001>
module attributes {stable_mosaic.version = 11 : i64} {
  func.func @_self_reflection_kernel(%arg0: i32, %arg1: memref<1xf32, #tpu.memory_space<smem>>, %arg2: memref<4x512xf32, #tpu.memory_space<vmem>>, %arg3: memref<4x512xf32, #tpu.memory_space<vmem>>) attributes {dimension_semantics = [#tpu.dimension_semantics<parallel>], iteration_bounds = array<i64: 1>, scalar_prefetch = 0 : i64, scratch_operands = 0 : i64, tpu.core_type = #tpu.core_type<tc>, window_params = [{transform_indices = @transform_0, window_bounds = array<i64: 1>}, {transform_indices = @transform_1, window_bounds = array<i64: 4, 512>}, {transform_indices = @transform_2, window_bounds = array<i64: 4, 512>}]} {
    %c0 = arith.constant 0 : index
    %0 = memref.load %arg1[%c0] : memref<1xf32, #tpu.memory_space<smem>>
    %c0_0 = arith.constant 0 : index
    %c0_1 = arith.constant 0 : index
    %1 = vector.load %arg2[%c0_0, %c0_1] : memref<4x512xf32, #tpu.memory_space<vmem>>, vector<4x512xf32>
    %2 = vector.broadcast %0 : f32 to vector<4x512xf32>
    %3 = arith.addf %1, %2 : vector<4x512xf32>
    %c0_2 = arith.constant 0 : index
    %c0_3 = arith.constant 0 : index
    %4 = vector.load %arg3[%c0_2, %c0_3] : memref<4x512xf32, #tpu.memory_space<vmem>>, vector<4x512xf32>
    tpu.vector_store %arg3[%c0_2, %c0_3], %3 {strides = array<i32>} : memref<4x512xf32, #tpu.memory_space<vmem>>, vector<4x512xf32>,
    return
  }
  func.func @transform_0(%arg0: i32) -> i32 {
    %c0_i32 = arith.constant 0 : i32
    %c0_i32_0 = arith.constant 0 : i32
    return %c0_i32 : i32
  }
  func.func @transform_1(%arg0: i32) -> (i32, i32) {
    %c0_i32 = arith.constant 0 : i32
    %c0_i32_0 = arith.constant 0 : i32
    return %arg0, %c0_i32 : i32, i32
  }
  func.func @transform_2(%arg0: i32) -> (i32, i32) {
    %c0_i32 = arith.constant 0 : i32
    %c0_i32_0 = arith.constant 0 : i32
    return %arg0, %c0_i32 : i32, i32
  }
}

</mosaic_0001>

<llo_original>
// kernel: tpu_custom_call.1
$region0: #{tpu_custom_call.1}
  #allocation0 [shape = 'u32[]', space=smem, size = 0x4, offset = 0x4, fixed_abs, tag = 'smem constant byte address 0x4 - core index']
  #allocation1 [shape = 'u32[144,128]{1,0:T(1,128)}', space=vmem, size = 0x12000, scoped, tag = 'internal scratch']
  #allocation2 [shape = 'f32[1]{0:T(128)S(6)}', space=smem, size = 0x200, scoped, tag = 'scoped memory for tpu_custom_call.1']
  %s0 = inlined_call_operand.<no memory space> [shape: f32[1], index: 0, kind: input, shape index: {}]
  %s1 = inlined_call_operand.hbm [shape: f32[4,512], index: 1, kind: input, shape index: {}]
  %s2 = inlined_call_operand.hbm [shape: f32[4,512], index: 2, kind: output, shape index: {}]
  %s3 = sld [smem:[#allocation0]]
  $region22: #{tpu_custom_call.1} parent=0
    _
  %s5 = ssub.s32 1, %s3
  %s6 = scalar_select 0, %s5, %s3
  %7 = sst [smem:[#allocation2]] %s0
  $region1: #{tpu_custom_call.1} parent=0
    #allocation3 [shape = 'u8[8192]{0}', space=vmem, size = 0x2000, scoped, tag = 'input window, operand 1, single buffered']
    #allocation4 [shape = 's32[1]{0}', space=sflag, size = 0x4, scoped, tag = 'scoped memory for tpu_custom_call.1']
    #allocation5 [shape = 's32[1]{0}', space=sflag, size = 0x4, scoped, tag = 'scoped memory for tpu_custom_call.1']
    #allocation6 [shape = 'u8[8192]{0}', space=vmem, size = 0x2000, scoped, tag = 'output window, operand 0, single buffered']
    %8 = vsyncpa [#allocation4], 0
    %9 = vsyncpa [#allocation5], 0
    // Predicated region
    $region2: #{tpu_custom_call.1} parent=1 // pred_check
      _
    $region3: #{tpu_custom_call.1} parent=1 // pred_check_branch
      %11 = sbr.rel (0) target = $region5
    $region4: #{tpu_custom_call.1} parent=1 // pred_region
      _
    $region5: #{tpu_custom_call.1} parent=1 // pred_fallthru
      _
    // Predicated region
    $region6: #{tpu_custom_call.1} parent=1 // pred_check
      _
    $region7: #{tpu_custom_call.1} parent=1 // pred_check_branch
      %13 = sbr.rel (0) target = $region9
    $region8: #{tpu_custom_call.1} parent=1 // pred_region
      %s15 = ssub.s32 256, 256
      %16 = vsyncadd [#allocation4], %s15
      %s18 = sshll.u32 [#allocation3], 4
      %s19 = int_to_ptr.vmem [resolvable:$true] %s18
      %21 = dma.hbm_to_vmem [thread:$0]  %s1, 256, %s19, [#allocation4]
    $region9: #{tpu_custom_call.1} parent=1 // pred_fallthru
      _
    // Predicated region
    $region10: #{tpu_custom_call.1} parent=1 // pred_check
      _
    $region11: #{tpu_custom_call.1} parent=1 // pred_check_branch
      %23 = sbr.rel (0) target = $region13
    $region12: #{tpu_custom_call.1} parent=1 // pred_region
      %24 = dma.done [#allocation4], 256
    $region13: #{tpu_custom_call.1} parent=1 // pred_fallthru
      _
    %s25 = sld [smem:[#allocation2]]
    %v26 = vld [vmem:[#allocation3] sm:$0xff]
    %v27 = vld [vmem:[#allocation3 + $0x8] sm:$0xff]
    %v28 = vstv %s25
    %v29 = vadd.f32 %v26, %v28
    %v30 = vadd.f32 %v27, %v28
    %31 = vst [vmem:[#allocation6] sm:$0xff] %v29
    %32 = vst [vmem:[#allocation6 + $0x8] sm:$0xff] %v30
    // Predicated region
    $region14: #{tpu_custom_call.1} parent=1 // pred_check
      _
    $region15: #{tpu_custom_call.1} parent=1 // pred_check_branch
      %34 = sbr.rel (0) target = $region17
    $region16: #{tpu_custom_call.1} parent=1 // pred_region
      %s36 = ssub.s32 256, 256
      %37 = vsyncadd [#allocation5], %s36
      %s39 = sshll.u32 [#allocation6], 4
      %s40 = int_to_ptr.vmem [resolvable:$true] %s39
      %42 = dma.vmem_to_hbm [thread:$0]  %s40, 256, %s2, [#allocation5]
    $region17: #{tpu_custom_call.1} parent=1 // pred_fallthru
      _
    // Predicated region
    $region18: #{tpu_custom_call.1} parent=1 // pred_check
      _
    $region19: #{tpu_custom_call.1} parent=1 // pred_check_branch
      %44 = sbr.rel (0) target = $region21
    $region20: #{tpu_custom_call.1} parent=1 // pred_region
      %45 = dma.done [#allocation5], 256
    $region21: #{tpu_custom_call.1} parent=1 // pred_fallthru
      _
    %46 = vsyncpa [#allocation4], 1
    %47 = vsyncpa [#allocation5], 1

</llo_original>
